<compile_context>
chip_gen: v5e
topology: v5e:2x2
jax: 0.10.0
libtpu: 0.0.40
codegen_flags: <defaults>
</compile_context>

<pallas_src>
import math

import jax
import jax.numpy as jnp
import numpy as np
from jax.experimental import pallas as pl
from jax.experimental.pallas import tpu as pltpu

LOG_STD = -0.5            # fixed actor log-std (synthetic deterministic actor)
LN_EPS = 1e-5             # nn.LayerNorm default eps
LOG_2PI = math.log(2.0 * math.pi)


def _round_up(x, m):
    return ((x + m - 1) // m) * m


def _cdiv(a, b):
    return (a + b - 1) // b


# ----------------------------------------------------------------------------
# Kernel: one batch tile per grid step; the whole 2E-MLP ensemble (plus the fused
# actor-mean head) is 3 lane-dense MXU matmuls; epilogue (transpose + mean/std)
# is fused so the kernel emits lane-dense (E,bb)/(1,bb)/(1,bb) slabs.
# ----------------------------------------------------------------------------
def _pro_critic_kernel(obs_ref, act_ref,
                       wt_ref, bt_ref, g_ref, beta_ref,
                       w1h_ref, w1a_ref, b1_ref,
                       w2_ref, b2_ref, w3_ref, b3_ref,
                       qs_ref, mean_ref, std_ref):
    obs = obs_ref[...]                                     # (bb, repr_dim) bf16
    act = act_ref[...]                                     # (bb, A)        f32
    act_b = act.astype(jnp.bfloat16)

    # ---- trunk: Linear -> LayerNorm (one-pass moments) -> Tanh (f32 VPU math) ----
    z = jnp.dot(obs, wt_ref[...], preferred_element_type=jnp.float32) + bt_ref[...]
    inv_f = 1.0 / z.shape[-1]
    mu = jnp.sum(z, axis=-1, keepdims=True) * inv_f
    msq = jnp.sum(z * z, axis=-1, keepdims=True) * inv_f
    var = jnp.maximum(msq - mu * mu, 0.0)
    h = jnp.tanh((z - mu) * jax.lax.rsqrt(var + LN_EPS) * g_ref[...] + beta_ref[...])
    h_b = h.astype(jnp.bfloat16)

    # ---- fused layer 1 of all 2E MLPs + actor-mean head (trailing A lanes) ----
    # concat(h, action) @ W1  ==  h @ W1h + action @ W1a   (avoids lane concat)
    y = (jnp.dot(h_b, w1h_ref[...], preferred_element_type=jnp.float32)
         + jnp.dot(act_b, w1a_ref[...], preferred_element_type=jnp.float32)
         + b1_ref[...])                                    # (bb, 2E*H + A)
    n_mlp = w2_ref.shape[0]                                # 2E*H

    # actor log-prob: Normal(mean = amu, std = exp(LOG_STD)), summed over action dim
    amu = y[:, n_mlp:]                                     # (bb, A)
    inv_var = math.exp(-2.0 * LOG_STD)
    logp = jnp.sum(-0.5 * (act - amu) ** 2 * inv_var - LOG_STD - 0.5 * LOG_2PI,
                   axis=-1, keepdims=True)                 # (bb, 1)

    # ---- fused layers 2 & 3 (block-diagonal W2, packed W3) ----
    y = jnp.maximum(y[:, :n_mlp], 0.0)
    y = jnp.dot(y.astype(jnp.bfloat16), w2_ref[...],
                preferred_element_type=jnp.float32) + b2_ref[...]
    y = jnp.maximum(y, 0.0)
    y = jnp.dot(y.astype(jnp.bfloat16), w3_ref[...],
                preferred_element_type=jnp.float32) + b3_ref[...]   # (bb, 2E)

    # ---- lane-dense transposed store: cols [0,E) are "M" heads, [E,2E) "B" heads ----
    n_heads = qs_ref.shape[0]                              # E
    y_t = jnp.transpose(y)                                 # (2E, bb)  (XLU, cheap)
    logp_t = jnp.transpose(logp)                           # (1, bb)
    qs_t = jnp.abs(y_t[:n_heads, :]) * logp_t + y_t[n_heads:, :]    # (E, bb)
    qs_ref[...] = qs_t

    # ---- fused ensemble epilogue: torch.std_mean (ddof=1), +0.001 after sqrt ----
    mean_t = jnp.sum(qs_t, axis=0, keepdims=True) * (1.0 / n_heads)
    var_t = jnp.sum((qs_t - mean_t) ** 2, axis=0, keepdims=True) * (1.0 / (n_heads - 1))
    mean_ref[...] = mean_t
    std_ref[...] = jnp.sqrt(var_t) + 0.001


# ----------------------------------------------------------------------------
# Host-side packing of the 2E per-MLP weights into fused / block-diagonal bf16 form.
# NOTE(v6e/v7x): 2E*H = 128 here only half-fills the 256-lane MXU per push; if the
# ensemble/hidden width (or co-scheduled critics) can grow, pack to a 256-lane width.
# ----------------------------------------------------------------------------
def _pack_params(p, ensemble_size, hidden_dim):
    E, H = ensemble_size, hidden_dim
    E2 = 2 * E
    w1h = np.asarray(p["w1h"], np.float32)     # (E2, F, H)
    w1a = np.asarray(p["w1a"], np.float32)     # (E2, A, H)
    b1 = np.asarray(p["b1"], np.float32)       # (E2, 1, H)
    w2 = np.asarray(p["w2"], np.float32)       # (E2, H, H)
    b2 = np.asarray(p["b2"], np.float32)       # (E2, 1, H)
    w3 = np.asarray(p["w3"], np.float32)       # (E2, H, 1)
    b3 = np.asarray(p["b3"], np.float32)       # (E2, 1, 1)
    wa = np.asarray(p["wa"], np.float32)       # (F, A)   actor mean head (fused)
    ba = np.asarray(p["ba"], np.float32)       # (1, A)
    F, A = w1h.shape[1], w1a.shape[1]
    W = E2 * H

    # layer 1 + fused actor-mean head in the trailing A columns
    W1h = np.zeros((F, W + A), np.float32)
    W1h[:, :W] = np.transpose(w1h, (1, 0, 2)).reshape(F, W)
    W1h[:, W:] = wa
    W1a = np.zeros((A, W + A), np.float32)
    W1a[:, :W] = np.transpose(w1a, (1, 0, 2)).reshape(A, W)
    B1 = np.zeros((1, W + A), np.float32)
    B1[:, :W] = b1.reshape(1, W)
    B1[:, W:] = ba

    # layer 2: block-diagonal
    W2 = np.zeros((W, W), np.float32)
    for j in range(E2):
        W2[j * H:(j + 1) * H, j * H:(j + 1) * H] = w2[j]
    B2 = b2.reshape(1, W)

    # layer 3: "M" heads -> cols [0,E), "B" heads -> cols [E,2E)
    W3 = np.zeros((W, E2), np.float32)
    B3 = np.zeros((1, E2), np.float32)
    for e in range(E):
        W3[(2 * e) * H:(2 * e + 1) * H, e] = w3[2 * e, :, 0]
        W3[(2 * e + 1) * H:(2 * e + 2) * H, E + e] = w3[2 * e + 1, :, 0]
        B3[0, e] = b3[2 * e, 0, 0]
        B3[0, E + e] = b3[2 * e + 1, 0, 0]

    return {
        "wt": jnp.asarray(np.asarray(p["wt"], np.float32), jnp.bfloat16),
        "bt": jnp.asarray(p["bt"], jnp.float32),
        "gamma": jnp.asarray(p["gamma"], jnp.float32),
        "beta": jnp.asarray(p["beta"], jnp.float32),
        "W1h": jnp.asarray(W1h, jnp.bfloat16),
        "W1a": jnp.asarray(W1a, jnp.bfloat16),
        "b1": jnp.asarray(B1, jnp.float32),
        "W2": jnp.asarray(W2, jnp.bfloat16),
        "b2": jnp.asarray(B2, jnp.float32),
        "W3": jnp.asarray(W3, jnp.bfloat16),
        "b3": jnp.asarray(B3, jnp.float32),
    }


# ----------------------------------------------------------------------------
# Batch-tile selection.  The Q output is lane-dense (E, bb) along the batch, so
# bb must be a multiple of 128 whenever the grid has more than one step; minimize
# padding, target `block_b` rows, keep >= 2 grid steps where possible (v7x megacore).
# ----------------------------------------------------------------------------
def _pick_tile(B, block_b):
    b8 = _round_up(B, 8)
    if b8 <= 256:
        if b8 > 128 and b8 % 128 == 0:
            return 128, b8                      # 2 grid steps, no extra padding
        return b8, b8                           # single tile covering the whole batch
    cap = max(128, _round_up(min(block_b, _cdiv(b8, 2)), 128))   # >= 2 grid steps
    best_bb, best_pad = 128, _round_up(b8, 128) - B
    for bb in range(256, cap + 1, 128):
        pad = _round_up(b8, bb) - B
        if pad < best_pad or (pad == best_pad and bb > best_bb):
            best_bb, best_pad = bb, pad
    return best_bb, _round_up(b8, best_bb)


# ----------------------------------------------------------------------------
# Wrapper: flatten obs (bf16), pad batch, tile batch on a parallel grid.  The
# kernel already returns the ensemble mean / std, so no XLA epilogue is needed.
# ----------------------------------------------------------------------------
def policy_ratio_critic(obs_nchw, action, params, ensemble_size, *, block_b=512):
    assert ensemble_size >= 2, "unbiased ensemble std (ddof=1) needs ensemble_size >= 2"
    B = obs_nchw.shape[0]
    obs = obs_nchw.reshape(B, -1).astype(jnp.bfloat16)     # bf16 MXU operand / half DMA
    act = action.astype(jnp.float32)                       # f32 (log-prob precision)
    E = ensemble_size
    H = params["w2"].shape[-1]
    packed = _pack_params(params, E, H)

    bb, B_pad = _pick_tile(B, block_b)
    if B_pad != B:
        obs = jnp.pad(obs, ((0, B_pad - B), (0, 0)))
        act = jnp.pad(act, ((0, B_pad - B), (0, 0)))

    def batch_spec(ncols):
        return pl.BlockSpec((bb, ncols), lambda i: (i, 0))

    def full_spec(shape):
        nd = len(shape)
        return pl.BlockSpec(shape, lambda i, _nd=nd: (0,) * _nd)

    weight_order = ["wt", "bt", "gamma", "beta",
                    "W1h", "W1a", "b1", "W2", "b2", "W3", "b3"]
    weights = [packed[k] for k in weight_order]
    ordered = [obs, act] + weights
    in_specs = ([batch_spec(obs.shape[1]), batch_spec(act.shape[1])]
                + [full_spec(w.shape) for w in weights])

    # VMEM budget: double-buffered batch tiles + resident weights (+ headroom).
    tile_bytes = bb * (obs.shape[1] * 2 + act.shape[1] * 4) + bb * (E + 2) * 4
    weight_bytes = sum(int(np.prod(w.shape)) * w.dtype.itemsize for w in weights)
    vmem_limit = int(min(64 << 20, max(32 << 20, 2 * (tile_bytes + weight_bytes) + (2 << 20))))

    qs, mean, std = pl.pallas_call(
        _pro_critic_kernel,
        out_shape=(jax.ShapeDtypeStruct((E, B_pad), jnp.float32),
                   jax.ShapeDtypeStruct((1, B_pad), jnp.float32),
                   jax.ShapeDtypeStruct((1, B_pad), jnp.float32)),
        grid=(B_pad // bb,),
        in_specs=in_specs,
        out_specs=(pl.BlockSpec((E, bb), lambda i: (0, i)),
                   pl.BlockSpec((1, bb), lambda i: (0, i)),
                   pl.BlockSpec((1, bb), lambda i: (0, i))),
        compiler_params=pltpu.CompilerParams(
            dimension_semantics=("parallel",),
            vmem_limit_bytes=vmem_limit),
    )(*ordered)

    mean = jnp.transpose(mean[:, :B])                      # (B, 1)
    std = jnp.transpose(std[:, :B])                        # (B, 1)
    qs_out = qs[:, :B, None]                               # (E, B, 1) torch-style Qs
    return mean, std, qs_out


# ----------------------------------------------------------------------------
# Pure-JAX f32 reference (unpacked per-MLP params -> also verifies the packing).
# The kernel uses bf16 MXU operands, so tolerances are loosened accordingly.
# ----------------------------------------------------------------------------
def _reference(obs_nchw, action, p, ensemble_size):
    B = obs_nchw.shape[0]
    obs = obs_nchw.reshape(B, -1).astype(jnp.float32)
    act = action.astype(jnp.float32)
    z = obs @ p["wt"] + p["bt"]
    mu = z.mean(-1, keepdims=True)
    var = ((z - mu) ** 2).mean(-1, keepdims=True)
    h = jnp.tanh((z - mu) / jnp.sqrt(var + LN_EPS) * p["gamma"] + p["beta"])
    amu = h @ p["wa"] + p["ba"]
    inv_var = math.exp(-2.0 * LOG_STD)
    logp = (-0.5 * (act - amu) ** 2 * inv_var - LOG_STD - 0.5 * LOG_2PI).sum(-1, keepdims=True)

    def mlp(i):
        y = jnp.maximum(h @ p["w1h"][i] + act @ p["w1a"][i] + p["b1"][i], 0.0)
        y = jnp.maximum(y @ p["w2"][i] + p["b2"][i], 0.0)
        return y @ p["w3"][i] + p["b3"][i]

    qs = jnp.stack([jnp.abs(mlp(2 * e)) * logp + mlp(2 * e + 1)
                    for e in range(ensemble_size)], axis=0)
    mean = qs.mean(axis=0)
    std = qs.std(axis=0, ddof=1) + 0.001
    return mean, std, qs


def _make_params(key, repr_dim, feature_dim, hidden_dim, action_dim, ensemble_size):
    E2 = 2 * ensemble_size
    ks = jax.random.split(key, 8)
    s = 0.1
    return {
        "wt": jax.random.normal(ks[0], (repr_dim, feature_dim), jnp.float32) * s,
        "bt": jnp.zeros((1, feature_dim), jnp.float32),
        "gamma": jnp.ones((1, feature_dim), jnp.float32),
        "beta": jnp.zeros((1, feature_dim), jnp.float32),
        "wa": jax.random.normal(ks[1], (feature_dim, action_dim), jnp.float32) * s,
        "ba": jnp.zeros((1, action_dim), jnp.float32),
        "w1h": jax.random.normal(ks[2], (E2, feature_dim, hidden_dim), jnp.float32) * s,
        "w1a": jax.random.normal(ks[3], (E2, action_dim, hidden_dim), jnp.float32) * s,
        "b1": jax.random.normal(ks[4], (E2, 1, hidden_dim), jnp.float32) * s,
        "w2": jax.random.normal(ks[5], (E2, hidden_dim, hidden_dim), jnp.float32) * s,
        "b2": jnp.zeros((E2, 1, hidden_dim), jnp.float32),
        "w3": jax.random.normal(ks[6], (E2, hidden_dim, 1), jnp.float32) * s,
        "b3": jax.random.normal(ks[7], (E2, 1, 1), jnp.float32) * s,
    }


if __name__ == "__main__":
    B = 8
    repr_shape = (4, 4, 4)          # -> repr_dim = 64
    feature_dim = 32
    hidden_dim = 32
    action_dim = 4
    ensemble_size = 2               # module builds ensemble_size*2 Q MLPs -> 2 PRO heads
                                    # 2E*hidden = 128 -> one v5e MXU tile / half a v6e tile

    repr_dim = math.prod(repr_shape)
    key = jax.random.PRNGKey(0)
    k_obs, k_act, k_par = jax.random.split(key, 3)

    obs = jax.random.normal(k_obs, (B,) + repr_shape, jnp.float32)   # NCHW-like
    action = jax.random.normal(k_act, (B, action_dim), jnp.float32)
    params = _make_params(k_par, repr_dim, feature_dim, hidden_dim,
                          action_dim, ensemble_size)

    mean, std, qs = policy_ratio_critic(obs, action, params, ensemble_size)
    jax.block_until_ready((mean, std, qs))

    r_mean, r_std, r_qs = _reference(obs, action, params, ensemble_size)
    assert not bool(jnp.isnan(mean).any()) and not bool(jnp.isinf(mean).any())
    # bf16 MXU operands vs f32 reference -> loosened tolerances (per perf review).
    np.testing.assert_allclose(np.asarray(mean), np.asarray(r_mean), atol=5e-2, rtol=5e-2)
    np.testing.assert_allclose(np.asarray(std), np.asarray(r_std), atol=5e-2, rtol=5e-2)
    np.testing.assert_allclose(np.asarray(qs), np.asarray(r_qs), atol=5e-2, rtol=5e-2)

    print("KERNEL_OK")
</pallas_src>

<mosaic_0001>
module attributes {stable_mosaic.version = 11 : i64} {
  func.func @_pro_critic_kernel(%arg0: i32, %arg1: memref<8x64xbf16, #tpu.memory_space<vmem>>, %arg2: memref<8x4xf32, #tpu.memory_space<vmem>>, %arg3: memref<64x32xbf16, #tpu.memory_space<vmem>>, %arg4: memref<1x32xf32, #tpu.memory_space<vmem>>, %arg5: memref<1x32xf32, #tpu.memory_space<vmem>>, %arg6: memref<1x32xf32, #tpu.memory_space<vmem>>, %arg7: memref<32x132xbf16, #tpu.memory_space<vmem>>, %arg8: memref<4x132xbf16, #tpu.memory_space<vmem>>, %arg9: memref<1x132xf32, #tpu.memory_space<vmem>>, %arg10: memref<128x128xbf16, #tpu.memory_space<vmem>>, %arg11: memref<1x128xf32, #tpu.memory_space<vmem>>, %arg12: memref<128x4xbf16, #tpu.memory_space<vmem>>, %arg13: memref<1x4xf32, #tpu.memory_space<vmem>>, %arg14: memref<2x8xf32, #tpu.memory_space<vmem>>, %arg15: memref<1x8xf32, #tpu.memory_space<vmem>>, %arg16: memref<1x8xf32, #tpu.memory_space<vmem>>) attributes {dimension_semantics = [#tpu.dimension_semantics<parallel>], iteration_bounds = array<i64: 1>, scalar_prefetch = 0 : i64, scratch_operands = 0 : i64, tpu.core_type = #tpu.core_type<tc>, window_params = [{transform_indices = @transform_0, window_bounds = array<i64: 8, 64>}, {transform_indices = @transform_1, window_bounds = array<i64: 8, 4>}, {pipeline_mode = #tpu.pipeline_mode<synchronous>, transform_indices = @transform_2, window_bounds = array<i64: 64, 32>}, {pipeline_mode = #tpu.pipeline_mode<synchronous>, transform_indices = @transform_3, window_bounds = array<i64: 1, 32>}, {pipeline_mode = #tpu.pipeline_mode<synchronous>, transform_indices = @transform_4, window_bounds = array<i64: 1, 32>}, {pipeline_mode = #tpu.pipeline_mode<synchronous>, transform_indices = @transform_5, window_bounds = array<i64: 1, 32>}, {pipeline_mode = #tpu.pipeline_mode<synchronous>, transform_indices = @transform_6, window_bounds = array<i64: 32, 132>}, {pipeline_mode = #tpu.pipeline_mode<synchronous>, transform_indices = @transform_7, window_bounds = array<i64: 4, 132>}, {pipeline_mode = #tpu.pipeline_mode<synchronous>, transform_indices = @transform_8, window_bounds = array<i64: 1, 132>}, {pipeline_mode = #tpu.pipeline_mode<synchronous>, transform_indices = @transform_9, window_bounds = array<i64: 128, 128>}, {pipeline_mode = #tpu.pipeline_mode<synchronous>, transform_indices = @transform_10, window_bounds = array<i64: 1, 128>}, {pipeline_mode = #tpu.pipeline_mode<synchronous>, transform_indices = @transform_11, window_bounds = array<i64: 128, 4>}, {pipeline_mode = #tpu.pipeline_mode<synchronous>, transform_indices = @transform_12, window_bounds = array<i64: 1, 4>}, {transform_indices = @transform_13, window_bounds = array<i64: 2, 8>}, {transform_indices = @transform_14, window_bounds = array<i64: 1, 8>}, {transform_indices = @transform_15, window_bounds = array<i64: 1, 8>}]} {
    %c0 = arith.constant 0 : index
    %c0_0 = arith.constant 0 : index
    %0 = vector.load %arg1[%c0, %c0_0] : memref<8x64xbf16, #tpu.memory_space<vmem>>, vector<8x64xbf16>
    %c0_1 = arith.constant 0 : index
    %c0_2 = arith.constant 0 : index
    %1 = vector.load %arg2[%c0_1, %c0_2] : memref<8x4xf32, #tpu.memory_space<vmem>>, vector<8x4xf32>
    %2 = arith.truncf %1 : vector<8x4xf32> to vector<8x4xbf16>
    %c0_3 = arith.constant 0 : index
    %c0_4 = arith.constant 0 : index
    %3 = vector.load %arg3[%c0_3, %c0_4] : memref<64x32xbf16, #tpu.memory_space<vmem>>, vector<64x32xbf16>
    %cst = arith.constant dense<0.000000e+00> : vector<8x32xf32>
    %4 = tpu.matmul %0, %3, %cst {dimension_numbers = #tpu.dot_dimension_numbers<[1], [0], [0], [1], [0, 0, 1, 1], [], []>} : vector<8x64xbf16>, vector<64x32xbf16>, vector<8x32xf32> -> vector<8x32xf32>
    %c0_5 = arith.constant 0 : index
    %c0_6 = arith.constant 0 : index
    %5 = vector.load %arg4[%c0_5, %c0_6] : memref<1x32xf32, #tpu.memory_space<vmem>>, vector<1x32xf32>
    %6 = vector.broadcast %5 : vector<1x32xf32> to vector<8x32xf32>
    %7 = arith.addf %4, %6 : vector<8x32xf32>
    %cst_7 = arith.constant dense<0.000000e+00> : vector<8xf32>
    %8 = vector.multi_reduction <add>, %7, %cst_7 [1] : vector<8x32xf32> to vector<8xf32>
    %9 = vector.shape_cast %8 : vector<8xf32> to vector<8x1xf32>
    %cst_8 = arith.constant 3.125000e-02 : f32
    %10 = vector.broadcast %cst_8 : f32 to vector<8x1xf32>
    %11 = arith.mulf %9, %10 : vector<8x1xf32>
    %12 = arith.mulf %7, %7 : vector<8x32xf32>
    %cst_9 = arith.constant dense<0.000000e+00> : vector<8xf32>
    %13 = vector.multi_reduction <add>, %12, %cst_9 [1] : vector<8x32xf32> to vector<8xf32>
    %14 = vector.shape_cast %13 : vector<8xf32> to vector<8x1xf32>
    %cst_10 = arith.constant 3.125000e-02 : f32
    %15 = vector.broadcast %cst_10 : f32 to vector<8x1xf32>
    %16 = arith.mulf %14, %15 : vector<8x1xf32>
    %17 = arith.mulf %11, %11 : vector<8x1xf32>
    %18 = arith.subf %16, %17 : vector<8x1xf32>
    %cst_11 = arith.constant 0.000000e+00 : f32
    %19 = vector.broadcast %cst_11 : f32 to vector<8x1xf32>
    %20 = arith.maximumf %18, %19 : vector<8x1xf32>
    %21 = vector.broadcast %11 : vector<8x1xf32> to vector<8x32xf32>
    %22 = arith.subf %7, %21 : vector<8x32xf32>
    %cst_12 = arith.constant 9.99999974E-6 : f32
    %23 = vector.broadcast %cst_12 : f32 to vector<8x1xf32>
    %24 = arith.addf %20, %23 : vector<8x1xf32>
    %25 = math.rsqrt %24 : vector<8x1xf32>
    %26 = vector.broadcast %25 : vector<8x1xf32> to vector<8x32xf32>
    %27 = arith.mulf %22, %26 : vector<8x32xf32>
    %c0_13 = arith.constant 0 : index
    %c0_14 = arith.constant 0 : index
    %28 = vector.load %arg5[%c0_13, %c0_14] : memref<1x32xf32, #tpu.memory_space<vmem>>, vector<1x32xf32>
    %29 = vector.broadcast %28 : vector<1x32xf32> to vector<8x32xf32>
    %30 = arith.mulf %27, %29 : vector<8x32xf32>
    %c0_15 = arith.constant 0 : index
    %c0_16 = arith.constant 0 : index
    %31 = vector.load %arg6[%c0_15, %c0_16] : memref<1x32xf32, #tpu.memory_space<vmem>>, vector<1x32xf32>
    %32 = vector.broadcast %31 : vector<1x32xf32> to vector<8x32xf32>
    %33 = arith.addf %30, %32 : vector<8x32xf32>
    %34 = math.tanh %33 : vector<8x32xf32>
    %35 = arith.truncf %34 : vector<8x32xf32> to vector<8x32xbf16>
    %c0_17 = arith.constant 0 : index
    %c0_18 = arith.constant 0 : index
    %36 = vector.load %arg7[%c0_17, %c0_18] : memref<32x132xbf16, #tpu.memory_space<vmem>>, vector<32x132xbf16>
    %cst_19 = arith.constant dense<0.000000e+00> : vector<8x132xf32>
    %37 = tpu.matmul %35, %36, %cst_19 {dimension_numbers = #tpu.dot_dimension_numbers<[1], [0], [0], [1], [0, 0, 1, 1], [], []>} : vector<8x32xbf16>, vector<32x132xbf16>, vector<8x132xf32> -> vector<8x132xf32>
    %c0_20 = arith.constant 0 : index
    %c0_21 = arith.constant 0 : index
    %38 = vector.load %arg8[%c0_20, %c0_21] : memref<4x132xbf16, #tpu.memory_space<vmem>>, vector<4x132xbf16>
    %cst_22 = arith.constant dense<0.000000e+00> : vector<8x132xf32>
    %39 = tpu.matmul %2, %38, %cst_22 {dimension_numbers = #tpu.dot_dimension_numbers<[1], [0], [0], [1], [0, 0, 1, 1], [], []>} : vector<8x4xbf16>, vector<4x132xbf16>, vector<8x132xf32> -> vector<8x132xf32>
    %40 = arith.addf %37, %39 : vector<8x132xf32>
    %c0_23 = arith.constant 0 : index
    %c0_24 = arith.constant 0 : index
    %41 = vector.load %arg9[%c0_23, %c0_24] : memref<1x132xf32, #tpu.memory_space<vmem>>, vector<1x132xf32>
    %42 = vector.broadcast %41 : vector<1x132xf32> to vector<8x132xf32>
    %43 = arith.addf %40, %42 : vector<8x132xf32>
    %44 = vector.extract_strided_slice %43 {offsets = [0, 128], sizes = [8, 4], strides = [1, 1]} : vector<8x132xf32> to vector<8x4xf32>
    %45 = arith.subf %1, %44 : vector<8x4xf32>
    %46 = arith.mulf %45, %45 : vector<8x4xf32>
    %cst_25 = arith.constant -5.000000e-01 : f32
    %47 = vector.broadcast %cst_25 : f32 to vector<8x4xf32>
    %48 = arith.mulf %47, %46 : vector<8x4xf32>
    %cst_26 = arith.constant 2.71828175 : f32
    %49 = vector.broadcast %cst_26 : f32 to vector<8x4xf32>
    %50 = arith.mulf %48, %49 : vector<8x4xf32>
    %cst_27 = arith.constant -5.000000e-01 : f32
    %51 = vector.broadcast %cst_27 : f32 to vector<8x4xf32>
    %52 = arith.subf %50, %51 : vector<8x4xf32>
    %cst_28 = arith.constant 0.918938517 : f32
    %53 = vector.broadcast %cst_28 : f32 to vector<8x4xf32>
    %54 = arith.subf %52, %53 : vector<8x4xf32>
    %cst_29 = arith.constant dense<0.000000e+00> : vector<8xf32>
    %55 = vector.multi_reduction <add>, %54, %cst_29 [1] : vector<8x4xf32> to vector<8xf32>
    %56 = vector.shape_cast %55 : vector<8xf32> to vector<8x1xf32>
    %57 = vector.extract_strided_slice %43 {offsets = [0, 0], sizes = [8, 128], strides = [1, 1]} : vector<8x132xf32> to vector<8x128xf32>
    %cst_30 = arith.constant 0.000000e+00 : f32
    %58 = vector.broadcast %cst_30 : f32 to vector<8x128xf32>
    %59 = arith.maximumf %57, %58 : vector<8x128xf32>
    %60 = arith.truncf %59 : vector<8x128xf32> to vector<8x128xbf16>
    %c0_31 = arith.constant 0 : index
    %c0_32 = arith.constant 0 : index
    %61 = vector.load %arg10[%c0_31, %c0_32] : memref<128x128xbf16, #tpu.memory_space<vmem>>, vector<128x128xbf16>
    %cst_33 = arith.constant dense<0.000000e+00> : vector<8x128xf32>
    %62 = tpu.matmul %60, %61, %cst_33 {dimension_numbers = #tpu.dot_dimension_numbers<[1], [0], [0], [1], [0, 0, 1, 1], [], []>} : vector<8x128xbf16>, vector<128x128xbf16>, vector<8x128xf32> -> vector<8x128xf32>
    %c0_34 = arith.constant 0 : index
    %c0_35 = arith.constant 0 : index
    %63 = vector.load %arg11[%c0_34, %c0_35] : memref<1x128xf32, #tpu.memory_space<vmem>>, vector<1x128xf32>
    %64 = vector.broadcast %63 : vector<1x128xf32> to vector<8x128xf32>
    %65 = arith.addf %62, %64 : vector<8x128xf32>
    %cst_36 = arith.constant 0.000000e+00 : f32
    %66 = vector.broadcast %cst_36 : f32 to vector<8x128xf32>
    %67 = arith.maximumf %65, %66 : vector<8x128xf32>
    %68 = arith.truncf %67 : vector<8x128xf32> to vector<8x128xbf16>
    %c0_37 = arith.constant 0 : index
    %c0_38 = arith.constant 0 : index
    %69 = vector.load %arg12[%c0_37, %c0_38] : memref<128x4xbf16, #tpu.memory_space<vmem>>, vector<128x4xbf16>
    %cst_39 = arith.constant dense<0.000000e+00> : vector<8x4xf32>
    %70 = tpu.matmul %68, %69, %cst_39 {dimension_numbers = #tpu.dot_dimension_numbers<[1], [0], [0], [1], [0, 0, 1, 1], [], []>} : vector<8x128xbf16>, vector<128x4xbf16>, vector<8x4xf32> -> vector<8x4xf32>
    %c0_40 = arith.constant 0 : index
    %c0_41 = arith.constant 0 : index
    %71 = vector.load %arg13[%c0_40, %c0_41] : memref<1x4xf32, #tpu.memory_space<vmem>>, vector<1x4xf32>
    %72 = vector.broadcast %71 : vector<1x4xf32> to vector<8x4xf32>
    %73 = arith.addf %70, %72 : vector<8x4xf32>
    %74 = tpu.transpose %73, [1, 0] : vector<8x4xf32> -> vector<4x8xf32>
    %75 = tpu.transpose %56, [1, 0] : vector<8x1xf32> -> vector<1x8xf32>
    %76 = vector.extract_strided_slice %74 {offsets = [0, 0], sizes = [2, 8], strides = [1, 1]} : vector<4x8xf32> to vector<2x8xf32>
    %77 = math.absf %76 : vector<2x8xf32>
    %78 = vector.broadcast %75 : vector<1x8xf32> to vector<2x8xf32>
    %79 = arith.mulf %77, %78 : vector<2x8xf32>
    %80 = vector.extract_strided_slice %74 {offsets = [2, 0], sizes = [2, 8], strides = [1, 1]} : vector<4x8xf32> to vector<2x8xf32>
    %81 = arith.addf %79, %80 : vector<2x8xf32>
    %c0_42 = arith.constant 0 : index
    %c0_43 = arith.constant 0 : index
    %82 = vector.load %arg14[%c0_42, %c0_43] : memref<2x8xf32, #tpu.memory_space<vmem>>, vector<2x8xf32>
    tpu.vector_store %arg14[%c0_42, %c0_43], %81 {strides = array<i32>} : memref<2x8xf32, #tpu.memory_space<vmem>>, vector<2x8xf32>,
    %cst_44 = arith.constant dense<0.000000e+00> : vector<8xf32>
    %83 = vector.multi_reduction <add>, %81, %cst_44 [0] : vector<2x8xf32> to vector<8xf32>
    %84 = vector.shape_cast %83 : vector<8xf32> to vector<1x8xf32>
    %cst_45 = arith.constant 5.000000e-01 : f32
    %85 = vector.broadcast %cst_45 : f32 to vector<1x8xf32>
    %86 = arith.mulf %84, %85 : vector<1x8xf32>
    %87 = vector.broadcast %86 : vector<1x8xf32> to vector<2x8xf32>
    %88 = arith.subf %81, %87 : vector<2x8xf32>
    %89 = arith.mulf %88, %88 : vector<2x8xf32>
    %cst_46 = arith.constant dense<0.000000e+00> : vector<8xf32>
    %90 = vector.multi_reduction <add>, %89, %cst_46 [0] : vector<2x8xf32> to vector<8xf32>
    %91 = vector.shape_cast %90 : vector<8xf32> to vector<1x8xf32>
    %cst_47 = arith.constant 1.000000e+00 : f32
    %92 = vector.broadcast %cst_47 : f32 to vector<1x8xf32>
    %93 = arith.mulf %91, %92 : vector<1x8xf32>
    %c0_48 = arith.constant 0 : index
    %c0_49 = arith.constant 0 : index
    %94 = vector.load %arg15[%c0_48, %c0_49] : memref<1x8xf32, #tpu.memory_space<vmem>>, vector<1x8xf32>
    tpu.vector_store %arg15[%c0_48, %c0_49], %86 {strides = array<i32>} : memref<1x8xf32, #tpu.memory_space<vmem>>, vector<1x8xf32>,
    %95 = math.sqrt %93 : vector<1x8xf32>
    %cst_50 = arith.constant 1.000000e-03 : f32
    %96 = vector.broadcast %cst_50 : f32 to vector<1x8xf32>
    %97 = arith.addf %95, %96 : vector<1x8xf32>
    %c0_51 = arith.constant 0 : index
    %c0_52 = arith.constant 0 : index
    %98 = vector.load %arg16[%c0_51, %c0_52] : memref<1x8xf32, #tpu.memory_space<vmem>>, vector<1x8xf32>
    tpu.vector_store %arg16[%c0_51, %c0_52], %97 {strides = array<i32>} : memref<1x8xf32, #tpu.memory_space<vmem>>, vector<1x8xf32>,
    return
  }
  func.func @transform_0(%arg0: i32) -> (i32, i32) {
    %c0_i32 = arith.constant 0 : i32
    %c0_i32_0 = arith.constant 0 : i32
    return %arg0, %c0_i32 : i32, i32
  }
  func.func @transform_1(%arg0: i32) -> (i32, i32) {
    %c0_i32 = arith.constant 0 : i32
    %c0_i32_0 = arith.constant 0 : i32
    return %arg0, %c0_i32 : i32, i32
  }
  func.func @transform_2(%arg0: i32) -> (i32, i32) {
    %c0_i32 = arith.constant 0 : i32
    %c0_i32_0 = arith.constant 0 : i32
    %c0_i32_1 = arith.constant 0 : i32
    return %c0_i32, %c0_i32_0 : i32, i32
  }
  func.func @transform_3(%arg0: i32) -> (i32, i32) {
    %c0_i32 = arith.constant 0 : i32
    %c0_i32_0 = arith.constant 0 : i32
    %c0_i32_1 = arith.constant 0 : i32
    return %c0_i32, %c0_i32_0 : i32, i32
  }
  func.func @transform_4(%arg0: i32) -> (i32, i32) {
    %c0_i32 = arith.constant 0 : i32
    %c0_i32_0 = arith.constant 0 : i32
    %c0_i32_1 = arith.constant 0 : i32
    return %c0_i32, %c0_i32_0 : i32, i32
  }
  func.func @transform_5(%arg0: i32) -> (i32, i32) {
    %c0_i32 = arith.constant 0 : i32
    %c0_i32_0 = arith.constant 0 : i32
    %c0_i32_1 = arith.constant 0 : i32
    return %c0_i32, %c0_i32_0 : i32, i32
  }
  func.func @transform_6(%arg0: i32) -> (i32, i32) {
    %c0_i32 = arith.constant 0 : i32
    %c0_i32_0 = arith.constant 0 : i32
    %c0_i32_1 = arith.constant 0 : i32
    return %c0_i32, %c0_i32_0 : i32, i32
  }
  func.func @transform_7(%arg0: i32) -> (i32, i32) {
    %c0_i32 = arith.constant 0 : i32
    %c0_i32_0 = arith.constant 0 : i32
    %c0_i32_1 = arith.constant 0 : i32
    return %c0_i32, %c0_i32_0 : i32, i32
  }
  func.func @transform_8(%arg0: i32) -> (i32, i32) {
    %c0_i32 = arith.constant 0 : i32
    %c0_i32_0 = arith.constant 0 : i32
    %c0_i32_1 = arith.constant 0 : i32
    return %c0_i32, %c0_i32_0 : i32, i32
  }
  func.func @transform_9(%arg0: i32) -> (i32, i32) {
    %c0_i32 = arith.constant 0 : i32
    %c0_i32_0 = arith.constant 0 : i32
    %c0_i32_1 = arith.constant 0 : i32
    return %c0_i32, %c0_i32_0 : i32, i32
  }
  func.func @transform_10(%arg0: i32) -> (i32, i32) {
    %c0_i32 = arith.constant 0 : i32
    %c0_i32_0 = arith.constant 0 : i32
    %c0_i32_1 = arith.constant 0 : i32
    return %c0_i32, %c0_i32_0 : i32, i32
  }
  func.func @transform_11(%arg0: i32) -> (i32, i32) {
    %c0_i32 = arith.constant 0 : i32
    %c0_i32_0 = arith.constant 0 : i32
    %c0_i32_1 = arith.constant 0 : i32
    return %c0_i32, %c0_i32_0 : i32, i32
  }
  func.func @transform_12(%arg0: i32) -> (i32, i32) {
    %c0_i32 = arith.constant 0 : i32
    %c0_i32_0 = arith.constant 0 : i32
    %c0_i32_1 = arith.constant 0 : i32
    return %c0_i32, %c0_i32_0 : i32, i32
  }
  func.func @transform_13(%arg0: i32) -> (i32, i32) {
    %c0_i32 = arith.constant 0 : i32
    %c0_i32_0 = arith.constant 0 : i32
    return %c0_i32, %arg0 : i32, i32
  }
  func.func @transform_14(%arg0: i32) -> (i32, i32) {
    %c0_i32 = arith.constant 0 : i32
    %c0_i32_0 = arith.constant 0 : i32
    return %c0_i32, %arg0 : i32, i32
  }
  func.func @transform_15(%arg0: i32) -> (i32, i32) {
    %c0_i32 = arith.constant 0 : i32
    %c0_i32_0 = arith.constant 0 : i32
    return %c0_i32, %arg0 : i32, i32
  }
}

</mosaic_0001>

<llo_original>
// kernel: tpu_custom_call.1
$region0: #{tpu_custom_call.1}
  #allocation0 [shape = 'u32[]', space=smem, size = 0x4, offset = 0x4, fixed_abs, tag = 'smem constant byte address 0x4 - core index']
  #allocation1 [shape = 'u32[72,128]{1,0:T(1,128)}', space=vmem, size = 0x9000, scoped, tag = 'internal scratch']
  %s0 = inlined_call_operand.vmem [shape: bf16[8,64], index: 0, kind: input, shape index: {}]
  %s1 = inlined_call_operand.vmem [shape: f32[8,4], index: 1, kind: input, shape index: {}]
  %s2 = inlined_call_operand.vmem [shape: bf16[64,32], index: 2, kind: input, shape index: {}]
  %s3 = inlined_call_operand.vmem [shape: f32[1,32], index: 3, kind: input, shape index: {}]
  %s4 = inlined_call_operand.vmem [shape: f32[1,32], index: 4, kind: input, shape index: {}]
  %s5 = inlined_call_operand.vmem [shape: f32[1,32], index: 5, kind: input, shape index: {}]
  %s6 = inlined_call_operand.vmem [shape: bf16[32,132], index: 6, kind: input, shape index: {}]
  %s7 = inlined_call_operand.vmem [shape: bf16[4,132], index: 7, kind: input, shape index: {}]
  %s8 = inlined_call_operand.vmem [shape: f32[1,132], index: 8, kind: input, shape index: {}]
  %s9 = inlined_call_operand.vmem [shape: bf16[128,128], index: 9, kind: input, shape index: {}]
  %s10 = inlined_call_operand.vmem [shape: f32[1,128], index: 10, kind: input, shape index: {}]
  %s11 = inlined_call_operand.vmem [shape: bf16[128,4], index: 11, kind: input, shape index: {}]
  %s12 = inlined_call_operand.vmem [shape: f32[1,4], index: 12, kind: input, shape index: {}]
  %s13 = inlined_call_operand.hbm [shape: f32[2,8], index: 13, kind: output, shape index: {0}]
  %s14 = inlined_call_operand.hbm [shape: f32[1,8], index: 14, kind: output, shape index: {1}]
  %s15 = inlined_call_operand.hbm [shape: f32[1,8], index: 15, kind: output, shape index: {2}]
  %16 = xla_tuple %s13, %s14, %s15
  %s17 = sld [smem:[#allocation0]]
  $region78: #{tpu_custom_call.1} parent=0
    _
  %s19 = ssub.s32 1, %s17
  %s20 = scalar_select 0, %s19, %s17
  $region1: #{tpu_custom_call.1} parent=0
    #allocation2 [shape = 'u8[1024]{0}', space=vmem, size = 0x400, scoped, tag = 'output window, operand 0, single buffered']
    #allocation3 [shape = 's32[1]{0}', space=sflag, size = 0x4, scoped, tag = 'scoped memory for tpu_custom_call.1']
    #allocation4 [shape = 'u8[512]{0}', space=vmem, size = 0x400, scoped, tag = 'output window, operand 1, single buffered']
    #allocation5 [shape = 's32[1]{0}', space=sflag, size = 0x4, scoped, tag = 'scoped memory for tpu_custom_call.1']
    #allocation6 [shape = 'u8[512]{0}', space=vmem, size = 0x400, scoped, tag = 'output window, operand 2, single buffered']
    %21 = vsyncpa [#allocation3], 0
    %22 = vsyncpa [#allocation5], 0
    // Predicated region
    $region2: #{tpu_custom_call.1} parent=1 // pred_check
      _
    $region3: #{tpu_custom_call.1} parent=1 // pred_check_branch
      %24 = sbr.rel (0) target = $region5
    $region4: #{tpu_custom_call.1} parent=1 // pred_region
      _
    $region5: #{tpu_custom_call.1} parent=1 // pred_fallthru
      _
    // Predicated region
    $region6: #{tpu_custom_call.1} parent=1 // pred_check
      _
    $region7: #{tpu_custom_call.1} parent=1 // pred_check_branch
      %26 = sbr.rel (0) target = $region9
    $region8: #{tpu_custom_call.1} parent=1 // pred_region
      _
    $region9: #{tpu_custom_call.1} parent=1 // pred_fallthru
      _
    // Predicated region
    $region10: #{tpu_custom_call.1} parent=1 // pred_check
      _
    $region11: #{tpu_custom_call.1} parent=1 // pred_check_branch
      %28 = sbr.rel (0) target = $region13
    $region12: #{tpu_custom_call.1} parent=1 // pred_region
      _
    $region13: #{tpu_custom_call.1} parent=1 // pred_fallthru
      _
    // Predicated region
    $region14: #{tpu_custom_call.1} parent=1 // pred_check
      _
    $region15: #{tpu_custom_call.1} parent=1 // pred_check_branch
      %30 = sbr.rel (0) target = $region17
    $region16: #{tpu_custom_call.1} parent=1 // pred_region
      _
    $region17: #{tpu_custom_call.1} parent=1 // pred_fallthru
      _
    // Predicated region
    $region18: #{tpu_custom_call.1} parent=1 // pred_check
      _
    $region19: #{tpu_custom_call.1} parent=1 // pred_check_branch
      %32 = sbr.rel (0) target = $region21
    $region20: #{tpu_custom_call.1} parent=1 // pred_region
      _
    $region21: #{tpu_custom_call.1} parent=1 // pred_fallthru
      _
    // Predicated region
    $region22: #{tpu_custom_call.1} parent=1 // pred_check
      _
    $region23: #{tpu_custom_call.1} parent=1 // pred_check_branch
      %34 = sbr.rel (0) target = $region25
    $region24: #{tpu_custom_call.1} parent=1 // pred_region
      _
    $region25: #{tpu_custom_call.1} parent=1 // pred_fallthru
      _
    // Predicated region
    $region26: #{tpu_custom_call.1} parent=1 // pred_check
      _
    $region27: #{tpu_custom_call.1} parent=1 // pred_check_branch
      %36 = sbr.rel (0) target = $region29
    $region28: #{tpu_custom_call.1} parent=1 // pred_region
      _
    $region29: #{tpu_custom_call.1} parent=1 // pred_fallthru
      _
    // Predicated region
    $region30: #{tpu_custom_call.1} parent=1 // pred_check
      _
    $region31: #{tpu_custom_call.1} parent=1 // pred_check_branch
      %38 = sbr.rel (0) target = $region33
    $region32: #{tpu_custom_call.1} parent=1 // pred_region
      _
    $region33: #{tpu_custom_call.1} parent=1 // pred_fallthru
      _
    // Predicated region
    $region34: #{tpu_custom_call.1} parent=1 // pred_check
      _
    $region35: #{tpu_custom_call.1} parent=1 // pred_check_branch
      %40 = sbr.rel (0) target = $region37
    $region36: #{tpu_custom_call.1} parent=1 // pred_region
      _
    $region37: #{tpu_custom_call.1} parent=1 // pred_fallthru
      _
    // Predicated region
    $region38: #{tpu_custom_call.1} parent=1 // pred_check
      _
    $region39: #{tpu_custom_call.1} parent=1 // pred_check_branch
      %42 = sbr.rel (0) target = $region41
    $region40: #{tpu_custom_call.1} parent=1 // pred_region
      _
    $region41: #{tpu_custom_call.1} parent=1 // pred_fallthru
      _
    // Predicated region
    $region42: #{tpu_custom_call.1} parent=1 // pred_check
      _
    $region43: #{tpu_custom_call.1} parent=1 // pred_check_branch
      %44 = sbr.rel (0) target = $region45
    $region44: #{tpu_custom_call.1} parent=1 // pred_region
      _
    $region45: #{tpu_custom_call.1} parent=1 // pred_fallthru
      _
    // Predicated region
    $region46: #{tpu_custom_call.1} parent=1 // pred_check
      _
    $region47: #{tpu_custom_call.1} parent=1 // pred_check_branch
      %46 = sbr.rel (0) target = $region49
    $region48: #{tpu_custom_call.1} parent=1 // pred_region
      _
    $region49: #{tpu_custom_call.1} parent=1 // pred_fallthru
      _
    // Predicated region
    $region50: #{tpu_custom_call.1} parent=1 // pred_check
      _
    $region51: #{tpu_custom_call.1} parent=1 // pred_check_branch
      %48 = sbr.rel (0) target = $region53
    $region52: #{tpu_custom_call.1} parent=1 // pred_region
      _
    $region53: #{tpu_custom_call.1} parent=1 // pred_fallthru
      _
    %v50 = vld [vmem:[%s0] sm:$0xf]
    %v51 = vld [vmem:[%s1] sm:$0xff]
    %v52 = vpack.c.bf16 %v51, %v51
    %v53 = vld [vmem:[%s2] sm:$0xf]
    %v54 = vld [vmem:[%s2 + $0x4] sm:$0xf]
    %v55 = vld [vmem:[%s2 + $0x8] sm:$0xf]
    %v56 = vld [vmem:[%s2 + $0xc] sm:$0xf]
    %v57 = vld [vmem:[%s2 + $0x10] sm:$0xf]
    %v58 = vld [vmem:[%s2 + $0x14] sm:$0xf]
    %v59 = vld [vmem:[%s2 + $0x18] sm:$0xf]
    %v60 = vld [vmem:[%s2 + $0x1c] sm:$0xf]
    %v61 = vld [vmem:[%s3] sm:$0x1]
    %v63 = vperm.slane %v61, 0
    %v73 = vunpack.c.l.b16 %v53
    %v74 = vunpack.c.l.b16 %v54
    %v75 = vunpack.c.l.b16 %v55
    %v76 = vunpack.c.l.b16 %v56
    %v77 = vunpack.c.l.b16 %v57
    %v78 = vunpack.c.l.b16 %v58
    %v79 = vunpack.c.l.b16 %v59
    %v80 = vunpack.c.l.b16 %v60
    %v81 = vpack.c.b16 %v74, %v73
    %v82 = vpack.c.b16 %v76, %v75
    %v83 = vpack.c.b16 %v78, %v77
    %v84 = vpack.c.b16 %v80, %v79
    %vm89 = vcmask 523264
    %v91 = vsel %vm89, %v50, 0
    %93 = vmatpush.bf16.msra.mxu0 0
    %94 = vmatpush.bf16.msra.mxu0 0
    %95 = vmatpush.bf16.msra.mxu0 0
    %96 = vmatpush.bf16.msra.mxu0 0
    %97 = vmatpush.bf16.msra.mxu0 %v84
    %98 = vmatpush.bf16.msra.mxu0 %v83
    %99 = vmatpush.bf16.msra.mxu0 %v82
    %100 = vmatpush.bf16.msra.mxu0 %v81
    %101 = vmatmul.bf16.gmra.mxu0 %v91
    %v102 = vpop.f32.mrf.mxu0
    %v103 = vadd.f32 %v63, %v102
    %v104 = vpop.f32.mrf.mxu0
    %105 = vdwg.mxu0
    %vm106 = vcmask 261120
    %v107 = vsel %vm106, %v103, 0.0
    %108 = vadd.xlane.f32.xlu0 %v107
    %v109 = vpop.xlane.xlu0 %108
    %v110 = vmul.f32 %v109, 0.03125
    %v111 = vmul.f32 %v103, %v103
    %v112 = vsel %vm106, %v111, 0.0
    %113 = vadd.xlane.f32.xlu0 %v112
    %v114 = vpop.xlane.xlu0 %113
    %v115 = vmul.f32 %v114, 0.03125
    %v116 = vmul.f32 %v110, %v110
    %v117 = vsub.f32 %v115, %v116
    %v118 = vmax.f32 %v117, 0.0
    %v119 = vsub.f32 %v103, %v110
    %v120 = vadd.f32 %v118, 1e-05
    %v121 = vrsqrt.pop %v120
    %v122 = vmul.f32 %v121, %v120
    %v123 = vmul.f32 %v122, %v121
    %v124 = vmul.f32 0.5, %v123
    %v125 = vsub.f32 1.5, %v124
    %v126 = vmul.f32 %v121, %v125
    %vm127 = vweird.f32 %v120
    %vm128 = vweird.f32 %v121
    %vm129 = vmor %vm127, %vm128
    %v130 = vsel %vm129, %v121, %v126
    %v131 = vmul.f32 %v119, %v130
    %v132 = vld [vmem:[%s4] sm:$0x1]
    %v134 = vperm.slane %v132, 0
    %v136 = vmul.f32 %v131, %v134
    %v137 = vld [vmem:[%s5] sm:$0x1]
    %v139 = vperm.slane %v137, 0
    %v141 = vadd.f32 %v136, %v139
    %v142 = vtanh.pop %v141
    %v143 = vpack.c.bf16 %v142, %v142
    %v144 = vld [vmem:[%s6] sm:$0xff]
    %v145 = vld [vmem:[%s6 + $0x8] sm:$0xff]
    %v146 = vld [vmem:[%s6 + $0x10] sm:$0xff]
    %v147 = vld [vmem:[%s6 + $0x18] sm:$0xff]
    %v148 = vld [vmem:[%s7] sm:$0xf]
    %150 = vst [vmem:[#allocation1] ss:$4 sm:$0xff] %v148
    %v151 = vld.sshfl [vmem:[#allocation1] sm:$0xff pattern:$0x73625140]
    %v152 = vld.sshfl [vmem:[#allocation1 + $0x8] sm:$0xff pattern:$0x73625140]
    %vm153 = vcmask 31744
    %v155 = vsel %vm153, %v52, 0
    %vm157 = vcmask 1041408
    %v158 = vsel %vm157, %v151, 0
    %v160 = vsel %vm157, %v152, 0
    %162 = vmatpush.bf16.msra.mxu0 0
    %163 = vmatpush.bf16.msra.mxu0 0
    %164 = vmatpush.bf16.msra.mxu0 0
    %165 = vmatpush.bf16.msra.mxu0 0
    %166 = vmatpush.bf16.msra.mxu0 0
    %167 = vmatpush.bf16.msra.mxu0 0
    %168 = vmatpush.bf16.msra.mxu0 0
    %169 = vmatpush.bf16.msra.mxu0 %v158
    %170 = vmatmul.bf16.gmra.mxu0 %v155
    %v171 = vpop.f32.mrf.mxu0
    %v172 = vadd.f32 0.0, %v171
    %v173 = vpop.f32.mrf.mxu0
    %174 = vdwg.mxu0
    %175 = vmatpush.bf16.msra.mxu0 0
    %176 = vmatpush.bf16.msra.mxu0 0
    %177 = vmatpush.bf16.msra.mxu0 0
    %178 = vmatpush.bf16.msra.mxu0 0
    %179 = vmatpush.bf16.msra.mxu0 0
    %180 = vmatpush.bf16.msra.mxu0 0
    %181 = vmatpush.bf16.msra.mxu0 0
    %182 = vmatpush.bf16.msra.mxu0 %v160
    %183 = vmatmul.bf16.gmra.mxu0 %v155
    %v184 = vpop.f32.mrf.mxu0
    %v185 = vadd.f32 0.0, %v184
    %v186 = vpop.f32.mrf.mxu0
    %187 = vdwg.mxu0
    %v192 = vunpack.c.l.b16 %v144
    %v193 = vunpack.c.h.b16 %v144
    %v194 = vunpack.c.l.b16 %v145
    %v195 = vunpack.c.h.b16 %v145
    %v196 = vunpack.c.l.b16 %v146
    %v197 = vunpack.c.h.b16 %v146
    %v198 = vunpack.c.l.b16 %v147
    %v199 = vunpack.c.h.b16 %v147
    %v200 = vpack.c.b16 %v194, %v192
    %v201 = vpack.c.b16 %v195, %v193
    %v202 = vpack.c.b16 %v198, %v196
    %v203 = vpack.c.b16 %v199, %v197
    %v209 = vsel %vm106, %v143, 0
    %211 = vmatpush.bf16.msra.mxu0 0
    %212 = vmatpush.bf16.msra.mxu0 0
    %213 = vmatpush.bf16.msra.mxu0 0
    %214 = vmatpush.bf16.msra.mxu0 0
    %215 = vmatpush.bf16.msra.mxu0 0
    %216 = vmatpush.bf16.msra.mxu0 0
    %217 = vmatpush.bf16.msra.mxu0 %v202
    %218 = vmatpush.bf16.msra.mxu0 %v200
    %219 = vmatmul.bf16.gmra.mxu0 %v209
    %v220 = vpop.f32.mrf.mxu0
    %v221 = vadd.f32 %v172, %v220
    %v222 = vpop.f32.mrf.mxu0
    %223 = vdwg.mxu0
    %224 = vmatpush.bf16.msra.mxu0 0
    %225 = vmatpush.bf16.msra.mxu0 0
    %226 = vmatpush.bf16.msra.mxu0 0
    %227 = vmatpush.bf16.msra.mxu0 0
    %228 = vmatpush.bf16.msra.mxu0 0
    %229 = vmatpush.bf16.msra.mxu0 0
    %230 = vmatpush.bf16.msra.mxu0 %v203
    %231 = vmatpush.bf16.msra.mxu0 %v201
    %232 = vmatmul.bf16.gmra.mxu0 %v209
    %v233 = vpop.f32.mrf.mxu0
    %v234 = vadd.f32 %v185, %v233
    %v235 = vpop.f32.mrf.mxu0
    %236 = vdwg.mxu0
    %v237 = vld [vmem:[%s8] sm:$0x3]
    %v239 = vperm.slane %v237, 0
    %v240 = vperm.slane %v237, 1
    %v243 = vadd.f32 %v221, %v239
    %v244 = vadd.f32 %v234, %v240
    %v245 = vsub.f32 %v51, %v244
    %v246 = vmul.f32 %v245, %v245
    %v247 = vmul.f32 %v246, -0.5
    %v248 = vmul.f32 %v247, 2.7182817
    %v249 = vsub.f32 %v248, -0.5
    %v250 = vsub.f32 %v249, 0.9189385
    %v251 = vsel %vm153, %v250, 0.0
    %252 = vadd.xlane.f32.xlu0 %v251
    %v253 = vpop.xlane.xlu0 %252
    %v254 = vmax.f32 %v243, 0.0
    %v255 = vpack.c.bf16 %v254, %v254
    %v256 = vld [vmem:[%s9] sm:$0xf]
    %v257 = vld [vmem:[%s9 + $0x4] sm:$0xf]
    %v258 = vld [vmem:[%s9 + $0x8] sm:$0xf]
    %v259 = vld [vmem:[%s9 + $0xc] sm:$0xf]
    %v260 = vld [vmem:[%s9 + $0x10] sm:$0xf]
    %v261 = vld [vmem:[%s9 + $0x14] sm:$0xf]
    %v262 = vld [vmem:[%s9 + $0x18] sm:$0xf]
    %v263 = vld [vmem:[%s9 + $0x1c] sm:$0xf]
    %v264 = vld [vmem:[%s9 + $0x20] sm:$0xf]
    %v265 = vld [vmem:[%s9 + $0x24] sm:$0xf]
    %v266 = vld [vmem:[%s9 + $0x28] sm:$0xf]
    %v267 = vld [vmem:[%s9 + $0x2c] sm:$0xf]
    %v268 = vld [vmem:[%s9 + $0x30] sm:$0xf]
    %v269 = vld [vmem:[%s9 + $0x34] sm:$0xf]
    %v270 = vld [vmem:[%s9 + $0x38] sm:$0xf]
    %v271 = vld [vmem:[%s9 + $0x3c] sm:$0xf]
    %v272 = vld [vmem:[%s10] sm:$0x1]
    %v274 = vperm.slane %v272, 0
    %v292 = vunpack.c.l.b16 %v256
    %v293 = vunpack.c.l.b16 %v257
    %v294 = vunpack.c.l.b16 %v258
    %v295 = vunpack.c.l.b16 %v259
    %v296 = vunpack.c.l.b16 %v260
    %v297 = vunpack.c.l.b16 %v261
    %v298 = vunpack.c.l.b16 %v262
    %v299 = vunpack.c.l.b16 %v263
    %v300 = vunpack.c.l.b16 %v264
    %v301 = vunpack.c.l.b16 %v265
    %v302 = vunpack.c.l.b16 %v266
    %v303 = vunpack.c.l.b16 %v267
    %v304 = vunpack.c.l.b16 %v268
    %v305 = vunpack.c.l.b16 %v269
    %v306 = vunpack.c.l.b16 %v270
    %v307 = vunpack.c.l.b16 %v271
    %v308 = vpack.c.b16 %v293, %v292
    %v309 = vpack.c.b16 %v295, %v294
    %v310 = vpack.c.b16 %v297, %v296
    %v311 = vpack.c.b16 %v299, %v298
    %v312 = vpack.c.b16 %v301, %v300
    %v313 = vpack.c.b16 %v303, %v302
    %v314 = vpack.c.b16 %v305, %v304
    %v315 = vpack.c.b16 %v307, %v306
    %324 = vmatpush.bf16.msra.mxu0 %v315
    %325 = vmatpush.bf16.msra.mxu0 %v314
    %326 = vmatpush.bf16.msra.mxu0 %v313
    %327 = vmatpush.bf16.msra.mxu0 %v312
    %328 = vmatpush.bf16.msra.mxu0 %v311
    %329 = vmatpush.bf16.msra.mxu0 %v310
    %330 = vmatpush.bf16.msra.mxu0 %v309
    %331 = vmatpush.bf16.msra.mxu0 %v308
    %332 = vmatmul.bf16.gmra.mxu0 %v255
    %v333 = vpop.f32.mrf.mxu0
    %v334 = vadd.f32 %v274, %v333
    %v335 = vpop.f32.mrf.mxu0
    %336 = vdwg.mxu0
    %v337 = vmax.f32 %v334, 0.0
    %v338 = vpack.c.bf16 %v337, %v337
    %v339 = vld [vmem:[%s11] sm:$0xf]
    %v340 = vld [vmem:[%s11 + $0x4] sm:$0xf]
    %v341 = vld [vmem:[%s11 + $0x8] sm:$0xf]
    %v342 = vld [vmem:[%s11 + $0xc] sm:$0xf]
    %v343 = vld [vmem:[%s11 + $0x10] sm:$0xf]
    %v344 = vld [vmem:[%s11 + $0x14] sm:$0xf]
    %v345 = vld [vmem:[%s11 + $0x18] sm:$0xf]
    %v346 = vld [vmem:[%s11 + $0x1c] sm:$0xf]
    %v347 = vld [vmem:[%s11 + $0x20] sm:$0xf]
    %v348 = vld [vmem:[%s11 + $0x24] sm:$0xf]
    %v349 = vld [vmem:[%s11 + $0x28] sm:$0xf]
    %v350 = vld [vmem:[%s11 + $0x2c] sm:$0xf]
    %v351 = vld [vmem:[%s11 + $0x30] sm:$0xf]
    %v352 = vld [vmem:[%s11 + $0x34] sm:$0xf]
    %v353 = vld [vmem:[%s11 + $0x38] sm:$0xf]
    %v354 = vld [vmem:[%s11 + $0x3c] sm:$0xf]
    %v355 = vld [vmem:[%s12] sm:$0x1]
    %v357 = vperm.slane %v355, 0
    %v375 = vunpack.c.l.b16 %v339
    %v376 = vunpack.c.l.b16 %v340
    %v377 = vunpack.c.l.b16 %v341
    %v378 = vunpack.c.l.b16 %v342
    %v379 = vunpack.c.l.b16 %v343
    %v380 = vunpack.c.l.b16 %v344
    %v381 = vunpack.c.l.b16 %v345
    %v382 = vunpack.c.l.b16 %v346
    %v383 = vunpack.c.l.b16 %v347
    %v384 = vunpack.c.l.b16 %v348
    %v385 = vunpack.c.l.b16 %v349
    %v386 = vunpack.c.l.b16 %v350
    %v387 = vunpack.c.l.b16 %v351
    %v388 = vunpack.c.l.b16 %v352
    %v389 = vunpack.c.l.b16 %v353
    %v390 = vunpack.c.l.b16 %v354
    %v391 = vpack.c.b16 %v376, %v375
    %v392 = vpack.c.b16 %v378, %v377
    %v393 = vpack.c.b16 %v380, %v379
    %v394 = vpack.c.b16 %v382, %v381
    %v395 = vpack.c.b16 %v384, %v383
    %v396 = vpack.c.b16 %v386, %v385
    %v397 = vpack.c.b16 %v388, %v387
    %v398 = vpack.c.b16 %v390, %v389
    %407 = vmatpush.bf16.msra.mxu0 %v398
    %408 = vmatpush.bf16.msra.mxu0 %v397
    %409 = vmatpush.bf16.msra.mxu0 %v396
    %410 = vmatpush.bf16.msra.mxu0 %v395
    %411 = vmatpush.bf16.msra.mxu0 %v394
    %412 = vmatpush.bf16.msra.mxu0 %v393
    %413 = vmatpush.bf16.msra.mxu0 %v392
    %414 = vmatpush.bf16.msra.mxu0 %v391
    %415 = vmatmul.bf16.gmra.mxu0 %v338
    %v416 = vpop.f32.mrf.mxu0
    %v417 = vadd.f32 %v357, %v416
    %v418 = vpop.f32.mrf.mxu0
    %419 = vdwg.mxu0
    %420 = vxpose.xlu0.b32.start [1/16] %v417, 128
    %421 = vxpose.xlu0.b32.cont [2/16] 0.0, 128
    %422 = vxpose.xlu0.b32.cont [3/16] 0.0, 128
    %423 = vxpose.xlu0.b32.cont [4/16] 0.0, 128
    %424 = vxpose.xlu0.b32.cont [5/16] 0.0, 128
    %425 = vxpose.xlu0.b32.cont [6/16] 0.0, 128
    %426 = vxpose.xlu0.b32.cont [7/16] 0.0, 128
    %427 = vxpose.xlu0.b32.cont [8/16] 0.0, 128
    %428 = vxpose.xlu0.b32.cont [9/16] 0.0, 128
    %429 = vxpose.xlu0.b32.cont [10/16] 0.0, 128
    %430 = vxpose.xlu0.b32.cont [11/16] 0.0, 128
    %431 = vxpose.xlu0.b32.cont [12/16] 0.0, 128
    %432 = vxpose.xlu0.b32.cont [13/16] 0.0, 128
    %433 = vxpose.xlu0.b32.cont [14/16] 0.0, 128
    %434 = vxpose.xlu0.b32.cont [15/16] 0.0, 128
    %435 = vxpose.xlu0.b32.end [16/16] 0.0, 128
    %v436 = vpop.trf.xlu0
    %v437 = vpop.trf.xlu0
    %v438 = vpop.trf.xlu0
    %v439 = vpop.trf.xlu0
    %v440 = vpop.trf.xlu0
    %v441 = vpop.trf.xlu0
    %v442 = vpop.trf.xlu0
    %v443 = vpop.trf.xlu0
    %v444 = vpop.trf.xlu0
    %v445 = vpop.trf.xlu0
    %v446 = vpop.trf.xlu0
    %v447 = vpop.trf.xlu0
    %v448 = vpop.trf.xlu0
    %v449 = vpop.trf.xlu0
    %v450 = vpop.trf.xlu0
    %v451 = vpop.trf.xlu0
    %452 = vxpose.xlu0.b32.start [1/16] %v253, 128
    %453 = vxpose.xlu0.b32.cont [2/16] 0.0, 128
    %454 = vxpose.xlu0.b32.cont [3/16] 0.0, 128
    %455 = vxpose.xlu0.b32.cont [4/16] 0.0, 128
    %456 = vxpose.xlu0.b32.cont [5/16] 0.0, 128
    %457 = vxpose.xlu0.b32.cont [6/16] 0.0, 128
    %458 = vxpose.xlu0.b32.cont [7/16] 0.0, 128
    %459 = vxpose.xlu0.b32.cont [8/16] 0.0, 128
    %460 = vxpose.xlu0.b32.cont [9/16] 0.0, 128
    %461 = vxpose.xlu0.b32.cont [10/16] 0.0, 128
    %462 = vxpose.xlu0.b32.cont [11/16] 0.0, 128
    %463 = vxpose.xlu0.b32.cont [12/16] 0.0, 128
    %464 = vxpose.xlu0.b32.cont [13/16] 0.0, 128
    %465 = vxpose.xlu0.b32.cont [14/16] 0.0, 128
    %466 = vxpose.xlu0.b32.cont [15/16] 0.0, 128
    %467 = vxpose.xlu0.b32.end [16/16] 0.0, 128
    %v468 = vpop.trf.xlu0
    %v469 = vpop.trf.xlu0
    %v470 = vpop.trf.xlu0
    %v471 = vpop.trf.xlu0
    %v472 = vpop.trf.xlu0
    %v473 = vpop.trf.xlu0
    %v474 = vpop.trf.xlu0
    %v475 = vpop.trf.xlu0
    %v476 = vpop.trf.xlu0
    %v477 = vpop.trf.xlu0
    %v478 = vpop.trf.xlu0
    %v479 = vpop.trf.xlu0
    %v480 = vpop.trf.xlu0
    %v481 = vpop.trf.xlu0
    %v482 = vpop.trf.xlu0
    %v483 = vpop.trf.xlu0
    %v484 = vand.u32 2147483647, %v436
    %v485 = vperm.slane %v468, 0
    %v486 = vmul.f32 %v484, %v485
    %v488 = vrot.slane %v436, 2
    %v490 = vadd.f32 %v486, %v488
    %vm491 = vcmask 58368
    %492 = vst.msk [vmem:[#allocation2] sm:$0x3] %vm491, %v490
    %v493 = vsel %vm491, %v490, 0.0
    %v494 = vrot.slane %v493, 4
    %v495 = vadd.f32 %v493, %v494
    %v496 = vrot.slane %v495, 2
    %v497 = vadd.f32 %v495, %v496
    %v498 = vrot.slane %v497, 1
    %v499 = vadd.f32 %v497, %v498
    %v500 = vmul.f32 %v499, 0.5
    %v501 = vsub.f32 %v490, %v500
    %v502 = vmul.f32 %v501, %v501
    %v503 = vsel %vm491, %v502, 0.0
    %v504 = vrot.slane %v503, 4
    %v505 = vadd.f32 %v503, %v504
    %v506 = vrot.slane %v505, 2
    %v507 = vadd.f32 %v505, %v506
    %v508 = vrot.slane %v507, 1
    %v509 = vadd.f32 %v507, %v508
    %vm510 = vcmask 57344
    %511 = vst.msk [vmem:[#allocation4] sm:$0x1] %vm510, %v500
    %v512 = vrsqrt.pop %v509
    %v513 = vmul.f32 %v512, %v509
    %v514 = vmul.f32 %v513, %v512
    %v515 = vmul.f32 0.5, %v514
    %v516 = vsub.f32 1.5, %v515
    %v517 = vmul.f32 %v512, %v516
    %v518 = vmul.f32 %v509, %v517
    %vm519 = vcmp.eq.f32.partialorder %v509, inf
    %v520 = vsel %vm519, %v509, %v518
    %vm521 = vcmp.eq.f32.partialorder %v509, 0.0
    %v522 = vand.u32 %v509, 2147483648
    %v523 = vsel %vm521, %v522, %v520
    %v524 = vadd.f32 %v523, 0.001
    %525 = vst.msk [vmem:[#allocation6] sm:$0x1] %vm510, %v524
    // Predicated region
    $region54: #{tpu_custom_call.1} parent=1 // pred_check
      _
    $region55: #{tpu_custom_call.1} parent=1 // pred_check_branch
      %527 = sbr.rel (0) target = $region57
    $region56: #{tpu_custom_call.1} parent=1 // pred_region
      %529 = vsyncadd [#allocation3], 0
      %s531 = sshll.u32 [#allocation2], 4
      %s532 = int_to_ptr.vmem [resolvable:$true] %s531
      %s533 = sshll.u32 %s13, 4
      %s534 = int_to_ptr.hbm [resolvable:$true] %s533
      %536 = dma.vmem_to_hbm [thread:$0]  %s532, 32, %s534, [#allocation3]
    $region57: #{tpu_custom_call.1} parent=1 // pred_fallthru
      _
    // Predicated region
    $region58: #{tpu_custom_call.1} parent=1 // pred_check
      _
    $region59: #{tpu_custom_call.1} parent=1 // pred_check_branch
      %538 = sbr.rel (0) target = $region61
    $region60: #{tpu_custom_call.1} parent=1 // pred_region
      %540 = vsyncadd [#allocation5], 0
      %s542 = sshll.u32 [#allocation4], 4
      %s543 = int_to_ptr.vmem [resolvable:$true] %s542
      %s544 = sshll.u32 %s14, 4
      %s545 = int_to_ptr.hbm [resolvable:$true] %s544
      %547 = dma.vmem_to_hbm [thread:$0]  %s543, 16, %s545, [#allocation5]
    $region61: #{tpu_custom_call.1} parent=1 // pred_fallthru
      _
    // Predicated region
    $region62: #{tpu_custom_call.1} parent=1 // pred_check
      _
    $region63: #{tpu_custom_call.1} parent=1 // pred_check_branch
      %549 = sbr.rel (0) target = $region65
    $region64: #{tpu_custom_call.1} parent=1 // pred_region
      %551 = vsyncadd [#allocation5], 0
      %s553 = sshll.u32 [#allocation6], 4
      %s554 = int_to_ptr.vmem [resolvable:$true] %s553
      %s555 = sshll.u32 %s15, 4
      %s556 = int_to_ptr.hbm [resolvable:$true] %s555
      %558 = dma.vmem_to_hbm [thread:$0]  %s554, 16, %s556, [#allocation5]
    $region65: #{tpu_custom_call.1} parent=1 // pred_fallthru
      _
    // Predicated region
    $region66: #{tpu_custom_call.1} parent=1 // pred_check
      _
    $region67: #{tpu_custom_call.1} parent=1 // pred_check_branch
      %560 = sbr.rel (0) target = $region69
    $region68: #{tpu_custom_call.1} parent=1 // pred_region
      %562 = dma.done [#allocation3], 32
    $region69: #{tpu_custom_call.1} parent=1 // pred_fallthru
      _
    // Predicated region
    $region70: #{tpu_custom_call.1} parent=1 // pred_check
      _
    $region71: #{tpu_custom_call.1} parent=1 // pred_check_branch
      %564 = sbr.rel (0) target = $region73
    $region72: #{tpu_custom_call.1} parent=1 // pred_region
      %566 = dma.done [#allocation5], 16
    $region73: #{tpu_custom_call.1} parent=1 // pred_fallthru
      _
    // Predicated region
    $region74: #{tpu_custom_call.1} parent=1 // pred_check
      _
    $region75: #{tpu_custom_call.1} parent=1 // pred_check_branch
      %568 = sbr.rel (0) target = $region77
    $region76: #{tpu_custom_call.1} parent=1 // pred_region
      %570 = dma.done [#allocation5], 16
    $region77: #{tpu_custom_call.1} parent=1 // pred_fallthru
      _
    %571 = vsyncpa [#allocation3], 1
    %572 = vsyncpa [#allocation5], 1

</llo_original>
